<compile_context>
chip_gen: v7x
topology: tpu7x:2x2x1
jax: 0.10.0
libtpu: 0.0.40
codegen_flags: <defaults>
</compile_context>

<pallas_src>
import math

import jax
import jax.numpy as jnp
from jax.experimental import pallas as pl
from jax.experimental.pallas import tpu as pltpu

# --- synthetic "args" (small shapes consistent with the module) -------------
LATDIM = 32
ATT_HEAD = 4
N_NODES = 8

# Problems smaller than this (elements of nodeEmbed) bypass the Pallas kernel.
_SMALL_PROBLEM_ELEMS = 1 << 16  # ~64K


def _key_proj_kernel(x_ref, k_ref, o_ref):
    # One MXU matmul per row tile: [TM, latdim] @ [latdim, latdim] -> [TM, latdim].
    o_ref[...] = jnp.dot(
        x_ref[...], k_ref[...], preferred_element_type=jnp.float32
    ).astype(o_ref.dtype)


def _round_up8(x: int) -> int:
    return ((x + 7) // 8) * 8


def _pick_row_tile(n: int, latdim: int, itemsize: int, *,
                   vmem_budget_bytes: int,
                   weight_bufs: int,
                   max_tm: int = 8192,
                   min_grid_steps: int = 4) -> int:
    """Largest multiple-of-8 row tile that fits the VMEM budget while keeping
    >= min_grid_steps grid steps (so v7x's two TensorCores both get work)."""
    if n <= 8:
        return n  # full extent is always a legal block shape

    # Keep at least ~min_grid_steps steps when n allows it (>= 2 per v7x core).
    core_cap = max(8, _round_up8(pl.cdiv(n, min_grid_steps)))
    tm = min(max_tm, _round_up8(n), core_cap)

    def fits(t: int) -> bool:
        # double-buffered input rows + double-buffered output rows + resident weight
        footprint = (4 * t * latdim + weight_bufs * latdim * latdim) * itemsize
        return footprint <= vmem_budget_bytes

    while tm > 8 and not fits(tm):
        tm = max(8, ((tm // 2) // 8) * 8)
    return tm


def _vmem_capacity_bytes() -> int:
    # Generation-aware physical VMEM (per TensorCore); conservative fallback = v7x.
    try:
        info = pltpu.get_tpu_info()
        return int(getattr(info, "vmem_capacity_bytes", 64 << 20))
    except Exception:
        return 64 << 20


def prepare_key(node_embed: jax.Array, K: jax.Array, att_head: int,
                *, tm: int | None = None, force_pallas: bool = False) -> jax.Array:
    """Pallas equivalent of prepareKey.forward."""
    n, latdim = node_embed.shape
    assert K.shape == (latdim, latdim)
    assert latdim % att_head == 0
    head_dim = latdim // att_head
    itemsize = jnp.dtype(node_embed.dtype).itemsize

    if (not force_pallas) and (n * latdim < _SMALL_PROBLEM_ELEMS):
        # Small-problem bypass: launch/step overhead would dominate; let XLA fuse it.
        proj = jnp.dot(node_embed, K,
                       preferred_element_type=jnp.float32).astype(node_embed.dtype)
    else:
        vmem_cap = _vmem_capacity_bytes()
        tile_budget = min(24 << 20, vmem_cap // 2)

        # Resident weight: double-buffered by default; single-buffered once the
        # 2x copy would itself be a large VMEM bite (only matters for big latdim;
        # never triggered at the demo's latdim=32, keeping the demo path simple).
        if 2 * latdim * latdim * itemsize > (8 << 20):
            weight_bufs = 1
            w_spec = pl.BlockSpec((latdim, latdim), lambda i: (0, 0),
                                  pipeline_mode=pl.Buffered(1))
        else:
            weight_bufs = 2
            w_spec = pl.BlockSpec((latdim, latdim), lambda i: (0, 0))

        if tm is None:
            tm = _pick_row_tile(n, latdim, itemsize,
                                vmem_budget_bytes=tile_budget,
                                weight_bufs=weight_bufs)
        grid = (pl.cdiv(n, tm),)

        footprint = (4 * tm * latdim + weight_bufs * latdim * latdim) * itemsize
        # Generation-aware scoped-VMEM request: footprint + headroom, never more
        # than half the physical VMEM (v7x: 64 MiB -> request <= 32 MiB).
        vmem_limit = int(min(vmem_cap // 2, max(footprint + (1 << 20), 4 << 20)))
        if footprint > vmem_limit:
            # TODO(synk): tile K along latdim (extra reduction grid axis) for
            #             weights too large to keep resident in VMEM.
            raise ValueError(
                f"prepare_key: VMEM footprint {footprint} B exceeds limit "
                f"{vmem_limit} B; latdim={latdim} needs a K-tiled variant.")

        cost = pl.CostEstimate(
            flops=2 * n * latdim * latdim,
            transcendentals=0,
            bytes_accessed=itemsize * (2 * n * latdim + latdim * latdim),
        )

        proj = pl.pallas_call(
            _key_proj_kernel,
            out_shape=jax.ShapeDtypeStruct((n, latdim), node_embed.dtype),
            grid_spec=pltpu.PrefetchScalarGridSpec(
                num_scalar_prefetch=0,
                grid=grid,
                in_specs=[
                    # Row tile of activations: streamed / double-buffered.
                    pl.BlockSpec((tm, latdim), lambda i: (i, 0)),
                    # Weight: constant block index -> fetched once, VMEM-resident.
                    w_spec,
                ],
                out_specs=pl.BlockSpec((tm, latdim), lambda i: (i, 0)),
            ),
            compiler_params=pltpu.CompilerParams(
                dimension_semantics=("parallel",),
                vmem_limit_bytes=vmem_limit,
            ),
            cost_estimate=cost,
        )(node_embed, K)

    # Layout glue (matches torch.reshape + torch.permute([1, 0, 2])). Kept outside
    # the kernel so the kernel's stores stay lane-dense ([*, latdim]).
    key = proj.reshape(n, att_head, head_dim)
    key = jnp.transpose(key, (1, 0, 2))
    return key


def xavier_uniform(key, shape, dtype=jnp.float32):
    # torch.nn.init.xavier_uniform_ with gain=1.0
    fan_in, fan_out = shape[0], shape[1]
    limit = math.sqrt(6.0 / (fan_in + fan_out))
    return jax.random.uniform(key, shape, dtype=dtype, minval=-limit, maxval=limit)


def _ref(node_embed, K, att_head):
    n, latdim = node_embed.shape
    return jnp.transpose(
        (node_embed @ K).reshape(n, att_head, latdim // att_head), (1, 0, 2))


if __name__ == "__main__":
    root = jax.random.PRNGKey(0)
    k_param, k_small, k_big = jax.random.split(root, 3)

    # Deterministic parameter + inputs.
    K = xavier_uniform(k_param, (LATDIM, LATDIM))
    x_small = jax.random.normal(k_small, (N_NODES, LATDIM), dtype=jnp.float32)

    # 1) Default path at the module's tiny shape: takes the small-problem bypass.
    out_small = jax.block_until_ready(prepare_key(x_small, K, ATT_HEAD))
    ref_small = _ref(x_small, K, ATT_HEAD)
    assert out_small.shape == (ATT_HEAD, N_NODES, LATDIM // ATT_HEAD), out_small.shape
    assert jnp.allclose(out_small, ref_small, atol=1e-5, rtol=1e-5)

    # 2) Forced Pallas path at the same tiny shape (single full-extent block).
    out_small_k = jax.block_until_ready(
        prepare_key(x_small, K, ATT_HEAD, force_pallas=True))
    assert jnp.allclose(out_small_k, ref_small, atol=1e-5, rtol=1e-5)

    # 3) Forced Pallas path at a larger N: exercises multi-step row tiling
    #    (megacore-friendly grid of >= 4 steps) and the pipelined DMA path.
    N_BIG = 1024
    x_big = jax.random.normal(k_big, (N_BIG, LATDIM), dtype=jnp.float32)
    out_big = jax.block_until_ready(
        prepare_key(x_big, K, ATT_HEAD, force_pallas=True))
    ref_big = _ref(x_big, K, ATT_HEAD)
    assert out_big.shape == (ATT_HEAD, N_BIG, LATDIM // ATT_HEAD), out_big.shape
    assert jnp.allclose(out_big, ref_big, atol=1e-4, rtol=1e-5)

    print("KERNEL_OK")
</pallas_src>

<mosaic_0001>
module attributes {stable_mosaic.version = 11 : i64} {
  func.func @_key_proj_kernel(%arg0: i32, %arg1: memref<8x32xf32, #tpu.memory_space<vmem>>, %arg2: memref<32x32xf32, #tpu.memory_space<vmem>>, %arg3: memref<8x32xf32, #tpu.memory_space<vmem>>) attributes {dimension_semantics = [#tpu.dimension_semantics<parallel>], iteration_bounds = array<i64: 1>, scalar_prefetch = 0 : i64, scratch_operands = 0 : i64, tpu.core_type = #tpu.core_type<tc>, window_params = [{transform_indices = @transform_0, window_bounds = array<i64: 8, 32>}, {pipeline_mode = #tpu.pipeline_mode<synchronous>, transform_indices = @transform_1, window_bounds = array<i64: 32, 32>}, {transform_indices = @transform_2, window_bounds = array<i64: 8, 32>}]} {
    %c0 = arith.constant 0 : index
    %c0_0 = arith.constant 0 : index
    %0 = vector.load %arg1[%c0, %c0_0] : memref<8x32xf32, #tpu.memory_space<vmem>>, vector<8x32xf32>
    %c0_1 = arith.constant 0 : index
    %c0_2 = arith.constant 0 : index
    %1 = vector.load %arg2[%c0_1, %c0_2] : memref<32x32xf32, #tpu.memory_space<vmem>>, vector<32x32xf32>
    %cst = arith.constant dense<0.000000e+00> : vector<8x32xf32>
    %2 = tpu.matmul %0, %1, %cst {dimension_numbers = #tpu.dot_dimension_numbers<[1], [0], [0], [1], [0, 0, 1, 1], [], []>} : vector<8x32xf32>, vector<32x32xf32>, vector<8x32xf32> -> vector<8x32xf32>
    %c0_3 = arith.constant 0 : index
    %c0_4 = arith.constant 0 : index
    %3 = vector.load %arg3[%c0_3, %c0_4] : memref<8x32xf32, #tpu.memory_space<vmem>>, vector<8x32xf32>
    tpu.vector_store %arg3[%c0_3, %c0_4], %2 {strides = array<i32>} : memref<8x32xf32, #tpu.memory_space<vmem>>, vector<8x32xf32>,
    return
  }
  func.func @transform_0(%arg0: i32) -> (i32, i32) {
    %c0_i32 = arith.constant 0 : i32
    %c0_i32_0 = arith.constant 0 : i32
    return %arg0, %c0_i32 : i32, i32
  }
  func.func @transform_1(%arg0: i32) -> (i32, i32) {
    %c0_i32 = arith.constant 0 : i32
    %c0_i32_0 = arith.constant 0 : i32
    %c0_i32_1 = arith.constant 0 : i32
    return %c0_i32, %c0_i32_0 : i32, i32
  }
  func.func @transform_2(%arg0: i32) -> (i32, i32) {
    %c0_i32 = arith.constant 0 : i32
    %c0_i32_0 = arith.constant 0 : i32
    return %arg0, %c0_i32 : i32, i32
  }
}

</mosaic_0001>

<llo_original>
// kernel: tpu_custom_call.1
$region0: #{tpu_custom_call.1}
  #allocation0 [shape = 'u32[]', space=smem, size = 0x4, offset = 0x4, fixed_abs, tag = 'smem constant byte address 0x4 - core index']
  #allocation1 [shape = 'u32[144,128]{1,0:T(1,128)}', space=vmem, size = 0x12000, scoped, tag = 'internal scratch']
  %s0 = inlined_call_operand.hbm [shape: f32[8,32], index: 0, kind: input, shape index: {}]
  %s1 = inlined_call_operand.hbm [shape: f32[32,32], index: 1, kind: input, shape index: {}]
  %s2 = inlined_call_operand.hbm [shape: f32[8,32], index: 2, kind: output, shape index: {}]
  %s3 = sld [smem:[#allocation0]]
  $region26: #{tpu_custom_call.1} parent=0
    _
  %s5 = ssub.s32 1, %s3
  %s6 = scalar_select 0, %s5, %s3
  $region1: #{tpu_custom_call.1} parent=0
    #allocation2 [shape = 'u8[4096]{0}', space=vmem, size = 0x1000, scoped, tag = 'input window, operand 0, single buffered']
    #allocation3 [shape = 's32[1]{0}', space=sflag, size = 0x4, scoped, tag = 'scoped memory for tpu_custom_call.1']
    #allocation4 [shape = 's32[1]{0}', space=sflag, size = 0x4, scoped, tag = 'scoped memory for tpu_custom_call.1']
    #allocation5 [shape = 'u8[16384]{0}', space=vmem, size = 0x4000, scoped, tag = 'input window, operand 1, single buffered']
    #allocation6 [shape = 's32[1]{0}', space=sflag, size = 0x4, scoped, tag = 'scoped memory for tpu_custom_call.1']
    #allocation7 [shape = 'u8[4096]{0}', space=vmem, size = 0x1000, scoped, tag = 'output window, operand 0, single buffered']
    %7 = vsyncpa [#allocation3], 0
    %8 = vsyncpa [#allocation6], 0
    %9 = vsyncpa [#allocation4], 0
    // Predicated region
    $region2: #{tpu_custom_call.1} parent=1 // pred_check
      _
    $region3: #{tpu_custom_call.1} parent=1 // pred_check_branch
      %11 = sbr.rel (0) target = $region5
    $region4: #{tpu_custom_call.1} parent=1 // pred_region
      %s13 = ssub.s32 128, 128
      %14 = vsyncadd [#allocation3], %s13
      %s16 = sshll.u32 [#allocation2], 4
      %s17 = int_to_ptr.vmem [resolvable:$true] %s16
      %19 = dma.hbm_to_vmem [thread:$0]  %s0, 128, %s17, [#allocation3]
    $region5: #{tpu_custom_call.1} parent=1 // pred_fallthru
      _
    // Predicated region
    $region6: #{tpu_custom_call.1} parent=1 // pred_check
      _
    $region7: #{tpu_custom_call.1} parent=1 // pred_check_branch
      %21 = sbr.rel (0) target = $region9
    $region8: #{tpu_custom_call.1} parent=1 // pred_region
      %s23 = ssub.s32 512, 512
      %24 = vsyncadd [#allocation6], %s23
      %s25 = sshll.u32 [#allocation5], 4
      %s26 = int_to_ptr.vmem [resolvable:$true] %s25
      %31 = dma.hbm_to_vmem [thread:$0]  %s1, 512, %s26, [#allocation6], 128, 128, 8
    $region9: #{tpu_custom_call.1} parent=1 // pred_fallthru
      _
    // Predicated region
    $region10: #{tpu_custom_call.1} parent=1 // pred_check
      _
    $region11: #{tpu_custom_call.1} parent=1 // pred_check_branch
      %33 = sbr.rel (0) target = $region13
    $region12: #{tpu_custom_call.1} parent=1 // pred_region
      %34 = dma.done [#allocation3], 128
    $region13: #{tpu_custom_call.1} parent=1 // pred_fallthru
      _
    // Predicated region
    $region14: #{tpu_custom_call.1} parent=1 // pred_check
      _
    $region15: #{tpu_custom_call.1} parent=1 // pred_check_branch
      %36 = sbr.rel (0) target = $region17
    $region16: #{tpu_custom_call.1} parent=1 // pred_region
      %37 = dma.done [#allocation6], 512
    $region17: #{tpu_custom_call.1} parent=1 // pred_fallthru
      _
    %v38 = vld [vmem:[#allocation2] sm:$0xff]
    %v39 = vld [vmem:[#allocation5] sm:$0xff]
    %v40 = vld [vmem:[#allocation5 + $0x8] sm:$0xff]
    %v41 = vld [vmem:[#allocation5 + $0x10] sm:$0xff]
    %v42 = vld [vmem:[#allocation5 + $0x18] sm:$0xff]
    %vm43 = vcmask 261120
    %v45 = vsel %vm43, %v38, 0
    %47 = vmatprep.subr.mxu0 0.0
    %48 = vmatpush1.msra.mxu0 %v39
    %49 = vmatprep.subr.mxu0 0.0
    %50 = vmatpush1.msra.mxu0 %v40
    %51 = vmatprep.subr.mxu0 0.0
    %52 = vmatpush1.msra.mxu0 %v41
    %53 = vmatprep.subr.mxu0 0.0
    %54 = vmatpush1.msra.mxu0 %v42
    %55 = vmatprep.subr.mxu0 0.0
    %56 = vmatpush1.msra.mxu0 0.0
    %57 = vmatprep.subr.mxu0 0.0
    %58 = vmatpush1.msra.mxu0 0.0
    %59 = vmatprep.subr.mxu0 0.0
    %60 = vmatpush1.msra.mxu0 0.0
    %61 = vmatprep.subr.mxu0 0.0
    %62 = vmatpush1.msra.mxu0 0.0
    %63 = vmatprep.subr.mxu0 0.0
    %64 = vmatpush1.msra.mxu0 0.0
    %65 = vmatprep.subr.mxu0 0.0
    %66 = vmatpush1.msra.mxu0 0.0
    %67 = vmatprep.subr.mxu0 0.0
    %68 = vmatpush1.msra.mxu0 0.0
    %69 = vmatprep.subr.mxu0 0.0
    %70 = vmatpush1.msra.mxu0 0.0
    %71 = vmatprep.subr.mxu0 0.0
    %72 = vmatpush1.msra.mxu0 0.0
    %73 = vmatprep.subr.mxu0 0.0
    %74 = vmatpush1.msra.mxu0 0.0
    %75 = vmatprep.subr.mxu0 0.0
    %76 = vmatpush1.msra.mxu0 0.0
    %77 = vmatprep.subr.mxu0 0.0
    %78 = vmatpush1.msra.mxu0 0.0
    %79 = vmatprep.subr.mxu0 0.0
    %80 = vmatpush1.msra.mxu0 0.0
    %81 = vmatprep.subr.mxu0 0.0
    %82 = vmatpush1.msra.mxu0 0.0
    %83 = vmatprep.subr.mxu0 0.0
    %84 = vmatpush1.msra.mxu0 0.0
    %85 = vmatprep.subr.mxu0 0.0
    %86 = vmatpush1.msra.mxu0 0.0
    %87 = vmatprep.subr.mxu0 0.0
    %88 = vmatpush1.msra.mxu0 0.0
    %89 = vmatprep.subr.mxu0 0.0
    %90 = vmatpush1.msra.mxu0 0.0
    %91 = vmatprep.subr.mxu0 0.0
    %92 = vmatpush1.msra.mxu0 0.0
    %93 = vmatprep.subr.mxu0 0.0
    %94 = vmatpush1.msra.mxu0 0.0
    %95 = vmatprep.subr.mxu0 0.0
    %96 = vmatpush1.msra.mxu0 0.0
    %97 = vmatprep.subr.mxu0 0.0
    %98 = vmatpush1.msra.mxu0 0.0
    %99 = vmatprep.subr.mxu0 0.0
    %100 = vmatpush1.msra.mxu0 0.0
    %101 = vmatprep.subr.mxu0 0.0
    %102 = vmatpush1.msra.mxu0 0.0
    %103 = vmatprep.subr.mxu0 0.0
    %104 = vmatpush1.msra.mxu0 0.0
    %105 = vmatprep.subr.mxu0 0.0
    %106 = vmatpush1.msra.mxu0 0.0
    %107 = vmatprep.subr.mxu0 0.0
    %108 = vmatpush1.msra.mxu0 0.0
    %109 = vmatprep.subr.mxu0 0.0
    %110 = vmatpush1.msra.mxu0 0.0
    %111 = vmatprep.mubr.f32.mxu0 0.0
    %112 = vmatmul.mubr.f32.gmra.mrb[0].mxu0 %v45
    %v113 = vpop.f32.mrb[0].mxu0
    %v114 = vadd.f32 0.0, %v113
    %v115 = vpop.f32.mrb[0].mxu0
    %116 = vdwg.mxu0
    %117 = vst.msk [vmem:[#allocation7] sm:$0xff] %vm43, %v114
    // Predicated region
    $region18: #{tpu_custom_call.1} parent=1 // pred_check
      _
    $region19: #{tpu_custom_call.1} parent=1 // pred_check_branch
      %119 = sbr.rel (0) target = $region21
    $region20: #{tpu_custom_call.1} parent=1 // pred_region
      %s121 = ssub.s32 128, 128
      %122 = vsyncadd [#allocation4], %s121
      %s124 = sshll.u32 [#allocation7], 4
      %s125 = int_to_ptr.vmem [resolvable:$true] %s124
      %127 = dma.vmem_to_hbm [thread:$0]  %s125, 128, %s2, [#allocation4]
    $region21: #{tpu_custom_call.1} parent=1 // pred_fallthru
      _
    // Predicated region
    $region22: #{tpu_custom_call.1} parent=1 // pred_check
      _
    $region23: #{tpu_custom_call.1} parent=1 // pred_check_branch
      %129 = sbr.rel (0) target = $region25
    $region24: #{tpu_custom_call.1} parent=1 // pred_region
      %130 = dma.done [#allocation4], 128
    $region25: #{tpu_custom_call.1} parent=1 // pred_fallthru
      _
    %131 = vsyncpa [#allocation3], 1
    %132 = vsyncpa [#allocation6], 1
    %133 = vsyncpa [#allocation4], 1

</llo_original>
